<compile_context>
chip_gen: v7x
topology: tpu7x:2x2x1
jax: 0.10.0
libtpu: 0.0.40
codegen_flags: <defaults>
</compile_context>

<pallas_src>
import functools
import math

import jax
import jax.numpy as jnp
from jax.experimental import pallas as pl
from jax.experimental.pallas import tpu as pltpu


_INV_255 = 1.0 / 255.0

_LANE = 128      # last block dim must be a multiple of 128 (or the full dim)
_ROW_ALIGN = 32  # sublane alignment covering packed uint8 (32,128) and f32 (8,128)


def _cast_scale_kernel(obs_ref, out_ref):
    # preprocess_obs for a uint8 image Box with normalize_images=True:
    # float32 cast + /255, fused so the raw bytes are read once from HBM.
    # Multiplying by the f32 constant 1/255 differs from torch's x / 255.0 by
    # at most 1 ulp; an exact divide would cost ~8x more VPU/EUP work per
    # element and risks leaving the purely HBM-bound regime on v7x.
    out_ref[...] = obs_ref[...].astype(jnp.float32) * jnp.float32(_INV_255)


class _HwConfig:
    def __init__(self, block_budget_bytes, pallas_min_bytes, two_tensorcores):
        self.block_budget_bytes = block_budget_bytes  # per-block in+out footprint
        self.pallas_min_bytes = pallas_min_bytes      # Pallas dispatch threshold
        self.two_tensorcores = two_tensorcores        # v7x: 2 TCs per chip


@functools.lru_cache(maxsize=None)
def _hw_config() -> _HwConfig:
    try:
        kind = jax.devices()[0].device_kind.lower()
    except Exception:
        kind = ""
    if "v7" in kind:
        # 32 MiB scoped-VMEM default (64 MiB physical), 3.2 TB/s HBM, 2 TCs.
        # Faster HBM -> raise the Pallas crossover (fixed launch cost is a
        # larger fraction of a few-us op).
        return _HwConfig(10 << 20, 16 << 20, True)
    if "v6" in kind:
        # 32 MiB scoped-VMEM default, ~1.4 TB/s HBM.
        return _HwConfig(10 << 20, 8 << 20, False)
    if "v5" in kind or not kind:
        # v5e's scoped-VMEM default is only 16 MiB -> keep blocks <= ~5 MiB so
        # double-buffering fits without raising vmem_limit_bytes.
        return _HwConfig(5 << 20, 4 << 20, False)
    # Unknown / older part: be conservative.
    return _HwConfig(4 << 20, 4 << 20, False)


def _round_up(x: int, m: int) -> int:
    return ((x + m - 1) // m) * m


def _choose_block(B: int, D: int, bytes_per_elem: int, budget_bytes: int):
    """Pick (row_block, col_block) whose in+out footprint fits budget_bytes.

    Legal block shapes: col_block is a multiple of 128 or the full D;
    row_block is a multiple of 32 (covers packed uint8 (32,128) tiles as well
    as f32 (8,128)) or the full B.  Pallas clamps ragged edge blocks itself,
    so neither block dim has to divide the array -- no host-side padding.
    """
    budget_elems = max(budget_bytes // bytes_per_elem, _ROW_ALIGN * _LANE)
    if B * D <= budget_elems:
        return B, D                              # whole array, one block
    if _ROW_ALIGN * D <= budget_elems:
        rb = (budget_elems // D) // _ROW_ALIGN * _ROW_ALIGN
        return rb, D                             # full-width rows, tile batch
    # A single 32-row group is already wider than the budget: tile lanes too.
    cb = max((budget_elems // _ROW_ALIGN) // _LANE * _LANE, _LANE)
    cb = min(cb, _round_up(D, _LANE))
    rb = B if B < _ROW_ALIGN else _ROW_ALIGN
    return rb, cb


def _dimension_semantics(grid, hw: _HwConfig):
    par = getattr(pltpu, "PARALLEL", "parallel")
    sems = [par] * len(grid)
    if hw.two_tensorcores:
        core_par = getattr(pltpu, "CORE_PARALLEL", None)
        longest = max(range(len(grid)), key=lambda ax: grid[ax])
        if core_par is not None and grid[longest] >= 2:
            # Shard the longest grid axis across v7x's two TensorCores so both
            # cores' DMA paths move HBM traffic (plain "parallel" is measured
            # near-neutral; only core_parallel changes codegen).
            sems[longest] = core_par
    return tuple(sems)


def _pallas_cast_scale(x2d: jax.Array, *, block_budget_bytes: int | None = None
                       ) -> jax.Array:
    """(B, D) uint8 observations -> (B, D) float32 obs/255, one HBM-bound pass."""
    B, D = x2d.shape
    hw = _hw_config()
    budget = hw.block_budget_bytes if block_budget_bytes is None else block_budget_bytes
    bpe = x2d.dtype.itemsize + 4          # bytes read + f32 bytes written per element
    rb, cb = _choose_block(B, D, bpe, budget)
    grid = (pl.cdiv(B, rb), pl.cdiv(D, cb))

    return pl.pallas_call(
        _cast_scale_kernel,
        out_shape=jax.ShapeDtypeStruct((B, D), jnp.float32),
        grid_spec=pltpu.PrefetchScalarGridSpec(
            num_scalar_prefetch=0,
            grid=grid,
            in_specs=[pl.BlockSpec((rb, cb), lambda i, j: (i, j))],
            out_specs=pl.BlockSpec((rb, cb), lambda i, j: (i, j)),
        ),
        compiler_params=pltpu.CompilerParams(
            dimension_semantics=_dimension_semantics(grid, hw),
        ),
        cost_estimate=pl.CostEstimate(
            flops=B * D,                      # one multiply per element
            transcendentals=0,
            bytes_accessed=B * D * bpe,       # 1 B/elem read + 4 B/elem write
        ),
    )(x2d)


def extract_features(obs: jax.Array, *, normalize_images: bool = True,
                     use_pallas: bool | None = None) -> jax.Array:
    """BaseModel.extract_features: preprocess_obs + FlattenExtractor.

    obs: (B, ...) observation batch (e.g. (B, C, H, W) uint8 images).
    returns: (B, prod(obs.shape[1:])) float32 features.
    """
    B = obs.shape[0]
    D = math.prod(obs.shape[1:])
    x2d = obs.reshape(B, D)               # nn.Flatten: free contiguous reshape

    # SB3's preprocess_obs only divides by 255 for uint8 image Box spaces;
    # all other observations are just cast to float32.
    scale = normalize_images and obs.dtype == jnp.uint8
    if not scale:
        return x2d.astype(jnp.float32)

    hw = _hw_config()
    total_bytes = B * D * (obs.dtype.itemsize + 4)
    if use_pallas is None:
        # Small-input fast path: launch + pipeline-warmup overhead dominates
        # and XLA's fused cast+scale hits the same HBM roofline with no launch
        # cost; the crossover moves up on v7x's faster HBM.
        use_pallas = total_bytes >= hw.pallas_min_bytes
    if not use_pallas:
        return x2d.astype(jnp.float32) * jnp.float32(_INV_255)
    return _pallas_cast_scale(x2d)


class BaseModelPallas:
    """Minimal JAX mirror of BaseModel's forward-relevant pieces
    (preprocess_obs + FlattenExtractor); forward() itself is abstract."""

    def __init__(self, obs_shape, normalize_images: bool = True):
        self.obs_shape = tuple(obs_shape)            # e.g. (C, H, W)
        self.normalize_images = normalize_images
        # FlattenExtractor has no parameters; features_dim = prod(obs_shape).
        self.features_dim = math.prod(obs_shape)

    def extract_features(self, obs: jax.Array,
                         use_pallas: bool | None = None) -> jax.Array:
        return extract_features(obs, normalize_images=self.normalize_images,
                                use_pallas=use_pallas)


if __name__ == "__main__":
    key = jax.random.PRNGKey(0)
    k0, k1, k2 = jax.random.split(key, 3)

    # --- Demo shape from the module (NCHW uint8 image observations). -------
    B, C, H, W = 2, 4, 16, 16
    obs = jax.random.randint(k0, (B, C, H, W), minval=0, maxval=256,
                             dtype=jnp.int32).astype(jnp.uint8)
    model = BaseModelPallas((C, H, W), normalize_images=True)

    # Force the Pallas path so the kernel is exercised at this tiny size
    # (default dispatch would use the fused-XLA fast path here).
    feats = jax.block_until_ready(model.extract_features(obs, use_pallas=True))
    ref = obs.reshape(B, C * H * W).astype(jnp.float32) / 255.0
    assert feats.shape == (B, C * H * W)
    assert feats.dtype == jnp.float32
    assert jnp.max(jnp.abs(feats - ref)) < 1e-6

    # Default dispatch (fast path at this size) must agree too.
    feats_fast = jax.block_until_ready(model.extract_features(obs))
    assert jnp.max(jnp.abs(feats_fast - ref)) < 1e-6

    # --- Feature dim NOT a multiple of 128 (D = 1200): handled with a
    #     full-dim column block and zero host-side padding/slicing. ---------
    obs_odd = jax.random.randint(k1, (6, 3, 20, 20), minval=0, maxval=256,
                                 dtype=jnp.int32).astype(jnp.uint8)
    feats_odd = jax.block_until_ready(extract_features(obs_odd, use_pallas=True))
    ref_odd = obs_odd.reshape(6, 3 * 20 * 20).astype(jnp.float32) / 255.0
    assert feats_odd.shape == (6, 1200)
    assert jnp.max(jnp.abs(feats_odd - ref_odd)) < 1e-6

    # --- Multi-step 2-D grid: force a tiny block budget so the blocked path
    #     runs even at small sizes (block (32, 512) over a (128, 1536) slab).
    obs_big = jax.random.randint(k2, (128, 6, 16, 16), minval=0, maxval=256,
                                 dtype=jnp.int32).astype(jnp.uint8)
    x2d_big = obs_big.reshape(128, 6 * 16 * 16)
    feats_big = jax.block_until_ready(
        _pallas_cast_scale(x2d_big, block_budget_bytes=80 * 1024))
    ref_big = x2d_big.astype(jnp.float32) / 255.0
    assert jnp.max(jnp.abs(feats_big - ref_big)) < 1e-6

    print("KERNEL_OK")
</pallas_src>

<mosaic_0001>
module attributes {stable_mosaic.version = 11 : i64} {
  func.func @_cast_scale_kernel(%arg0: i32, %arg1: i32, %arg2: memref<2x1024xi8, #tpu.memory_space<vmem>>, %arg3: memref<2x1024xf32, #tpu.memory_space<vmem>>) attributes {dimension_semantics = [#tpu.dimension_semantics<parallel>, #tpu.dimension_semantics<parallel>], iteration_bounds = array<i64: 1, 1>, scalar_prefetch = 0 : i64, scratch_operands = 0 : i64, tpu.core_type = #tpu.core_type<tc>, window_params = [{transform_indices = @transform_0, window_bounds = array<i64: 2, 1024>}, {transform_indices = @transform_1, window_bounds = array<i64: 2, 1024>}]} {
    %c0 = arith.constant 0 : index
    %c0_0 = arith.constant 0 : index
    %0 = vector.load %arg2[%c0, %c0_0] : memref<2x1024xi8, #tpu.memory_space<vmem>>, vector<2x1024xi8>
    %1 = arith.uitofp %0 : vector<2x1024xi8> to vector<2x1024xf32>
    %cst = arith.constant 0.00392156886 : f32
    %2 = vector.broadcast %cst : f32 to vector<2x1024xf32>
    %3 = arith.mulf %1, %2 : vector<2x1024xf32>
    %c0_1 = arith.constant 0 : index
    %c0_2 = arith.constant 0 : index
    %4 = vector.load %arg3[%c0_1, %c0_2] : memref<2x1024xf32, #tpu.memory_space<vmem>>, vector<2x1024xf32>
    tpu.vector_store %arg3[%c0_1, %c0_2], %3 {strides = array<i32>} : memref<2x1024xf32, #tpu.memory_space<vmem>>, vector<2x1024xf32>,
    return
  }
  func.func @transform_0(%arg0: i32, %arg1: i32) -> (i32, i32) {
    %c0_i32 = arith.constant 0 : i32
    return %arg0, %arg1 : i32, i32
  }
  func.func @transform_1(%arg0: i32, %arg1: i32) -> (i32, i32) {
    %c0_i32 = arith.constant 0 : i32
    return %arg0, %arg1 : i32, i32
  }
}

</mosaic_0001>

<llo_original>
// kernel: tpu_custom_call.1
$region0: #{tpu_custom_call.1}
  #allocation0 [shape = 'u32[]', space=smem, size = 0x4, offset = 0x4, fixed_abs, tag = 'smem constant byte address 0x4 - core index']
  #allocation1 [shape = 'u32[144,128]{1,0:T(1,128)}', space=vmem, size = 0x12000, scoped, tag = 'internal scratch']
  %s0 = inlined_call_operand.hbm [shape: u8[2,1024], index: 0, kind: input, shape index: {}]
  %s1 = inlined_call_operand.hbm [shape: f32[2,1024], index: 1, kind: output, shape index: {}]
  %s2 = sld [smem:[#allocation0]]
  $region18: #{tpu_custom_call.1} parent=0
    _
  %s4 = ssub.s32 1, %s2
  %s5 = scalar_select 0, %s4, %s2
  $region1: #{tpu_custom_call.1} parent=0
    #allocation2 [shape = 'u8[4096]{0}', space=vmem, size = 0x1000, scoped, tag = 'input window, operand 0, single buffered']
    #allocation3 [shape = 's32[1]{0}', space=sflag, size = 0x4, scoped, tag = 'scoped memory for tpu_custom_call.1']
    #allocation4 [shape = 's32[1]{0}', space=sflag, size = 0x4, scoped, tag = 'scoped memory for tpu_custom_call.1']
    #allocation5 [shape = 'u8[8192]{0}', space=vmem, size = 0x2000, scoped, tag = 'output window, operand 0, single buffered']
    %6 = vsyncpa [#allocation3], 0
    %7 = vsyncpa [#allocation4], 0
    // Predicated region
    $region2: #{tpu_custom_call.1} parent=1 // pred_check
      _
    $region3: #{tpu_custom_call.1} parent=1 // pred_check_branch
      %9 = sbr.rel (0) target = $region5
    $region4: #{tpu_custom_call.1} parent=1 // pred_region
      %s11 = ssub.s32 128, 128
      %12 = vsyncadd [#allocation3], %s11
      %s14 = sshll.u32 [#allocation2], 4
      %s15 = int_to_ptr.vmem [resolvable:$true] %s14
      %17 = dma.hbm_to_vmem [thread:$0]  %s0, 128, %s15, [#allocation3]
    $region5: #{tpu_custom_call.1} parent=1 // pred_fallthru
      _
    // Predicated region
    $region6: #{tpu_custom_call.1} parent=1 // pred_check
      _
    $region7: #{tpu_custom_call.1} parent=1 // pred_check_branch
      %19 = sbr.rel (0) target = $region9
    $region8: #{tpu_custom_call.1} parent=1 // pred_region
      %20 = dma.done [#allocation3], 128
    $region9: #{tpu_custom_call.1} parent=1 // pred_fallthru
      _
    %v21 = vld [vmem:[#allocation2] sm:$0xff]
    %v22 = vunpack.c.0.s8 %v21
    %v23 = vunpack.c.1.s8 %v21
    %v24 = vunpack.c.2.s8 %v21
    %v25 = vunpack.c.3.s8 %v21
    %v26 = vand.u32 %v22, 255
    %v27 = vand.u32 %v23, 255
    %v28 = vand.u32 %v24, 255
    %v29 = vand.u32 %v25, 255
    %v30 = vcvt.s32.f32 %v26
    %v31 = vcvt.s32.f32 %v27
    %v32 = vcvt.s32.f32 %v28
    %v33 = vcvt.s32.f32 %v29
    %v34 = vmul.f32 %v30, 0.003921569
    %v35 = vmul.f32 %v31, 0.003921569
    %v36 = vmul.f32 %v32, 0.003921569
    %v37 = vmul.f32 %v33, 0.003921569
    %v43 = vunpack.c.l.s4 1983009808
    %v44 = vunpack.c.0.s8 %v43
    %v45 = vlaneseq
    %v46 = vshrl.u32 %v45, 7
    %v47 = vsub.s32 %v44, %v46
    %v48 = vrot.slane %v34, %v47
    %v50 = vunpack.c.l.s4 1983009808
    %v51 = vunpack.c.0.s8 %v50
    %v52 = vlaneseq
    %v53 = vshrl.u32 %v52, 7
    %v54 = vsub.s32 %v51, %v53
    %v55 = vrot.slane %v35, %v54
    %v56 = vcombine.low %v48, %v55
    %v58 = vunpack.c.l.s4 1983009808
    %v59 = vunpack.c.0.s8 %v58
    %v60 = vlaneseq
    %v61 = vshrl.u32 %v60, 7
    %v62 = vsub.s32 %v59, %v61
    %v63 = vrot.slane %v36, %v62
    %v65 = vunpack.c.l.s4 1983009808
    %v66 = vunpack.c.0.s8 %v65
    %v67 = vlaneseq
    %v68 = vshrl.u32 %v67, 7
    %v69 = vsub.s32 %v66, %v68
    %v70 = vrot.slane %v37, %v69
    %v71 = vcombine.low %v63, %v70
    %74 = vst [vmem:[#allocation5] sm:$0xff] %v56
    %75 = vst [vmem:[#allocation5 + $0x8] sm:$0xff] %v71
    // Predicated region
    $region10: #{tpu_custom_call.1} parent=1 // pred_check
      _
    $region11: #{tpu_custom_call.1} parent=1 // pred_check_branch
      %77 = sbr.rel (0) target = $region13
    $region12: #{tpu_custom_call.1} parent=1 // pred_region
      %s79 = ssub.s32 256, 256
      %80 = vsyncadd [#allocation4], %s79
      %s82 = sshll.u32 [#allocation5], 4
      %s83 = int_to_ptr.vmem [resolvable:$true] %s82
      %85 = dma.vmem_to_hbm [thread:$0]  %s83, 256, %s1, [#allocation4]
    $region13: #{tpu_custom_call.1} parent=1 // pred_fallthru
      _
    // Predicated region
    $region14: #{tpu_custom_call.1} parent=1 // pred_check
      _
    $region15: #{tpu_custom_call.1} parent=1 // pred_check_branch
      %87 = sbr.rel (0) target = $region17
    $region16: #{tpu_custom_call.1} parent=1 // pred_region
      %88 = dma.done [#allocation4], 256
    $region17: #{tpu_custom_call.1} parent=1 // pred_fallthru
      _
    %89 = vsyncpa [#allocation3], 1
    %90 = vsyncpa [#allocation4], 1

</llo_original>
